<compile_context>
chip_gen: v5e
topology: v5e:2x2
jax: 0.10.0
libtpu: 0.0.40
codegen_flags: <defaults>
</compile_context>

<pallas_src>
import jax
import jax.numpy as jnp
from jax.experimental import pallas as pl
from jax.experimental.pallas import tpu as pltpu

LANE = 128     # lane width (last dim) — feature dims of weights padded to this
SUBLANE = 8    # sublane width (second-to-last dim) — batch tiles padded to this


def _round_up(n, m):
    return ((n + m - 1) // m) * m


def _pad2d(a, rows, cols):
    r, c = a.shape
    return jnp.pad(a, ((0, rows - r), (0, cols - c)))


# ---------------------------------------------------------------------------
# Kernel
# ---------------------------------------------------------------------------
def critic_kernel(x_ref, w1_ref, b1_ref, w2_ref, b2_ref, w3_ref, b3_ref,
                  o_ref, h_ref):
    # fc1 + ReLU: MXU matmul with f32 accumulation; the ReLU result is stored
    # directly in the compute dtype (bf16) so fc2 consumes it with no re-cast.
    x = x_ref[...].astype(w1_ref.dtype)
    h1 = jnp.dot(x, w1_ref[...], preferred_element_type=jnp.float32)
    h_ref[...] = jnp.maximum(h1 + b1_ref[...], 0.0).astype(h_ref.dtype)
    # fc2 + ReLU
    h2 = jnp.dot(h_ref[...], w2_ref[...], preferred_element_type=jnp.float32)
    h_ref[...] = jnp.maximum(h2 + b2_ref[...], 0.0).astype(h_ref.dtype)
    # fc3 (no activation), f32 output
    out = jnp.dot(h_ref[...], w3_ref[...], preferred_element_type=jnp.float32)
    o_ref[...] = (out + b3_ref[...]).astype(o_ref.dtype)


# ---------------------------------------------------------------------------
# One-time parameter preparation (hoisted out of the per-call path)
# ---------------------------------------------------------------------------
def prepare_params(params, dtype=jnp.bfloat16):
    """Pad hidden/output feature dims to lane multiples and cast weights to the
    MXU dtype ONCE. Keep the result on device and reuse it for every forward."""
    in_dim, hidden = params["w1"].shape
    action_dim = params["w3"].shape[1]
    hid_p = _round_up(hidden, LANE)
    out_p = _round_up(action_dim, LANE)
    prepped = {
        "w1": _pad2d(params["w1"], in_dim, hid_p).astype(dtype),
        "b1": _pad2d(params["b1"], 1, hid_p).astype(jnp.float32),
        "w2": _pad2d(params["w2"], hid_p, hid_p).astype(dtype),
        "b2": _pad2d(params["b2"], 1, hid_p).astype(jnp.float32),
        "w3": _pad2d(params["w3"], hid_p, out_p).astype(dtype),
        "b3": _pad2d(params["b3"], 1, out_p).astype(jnp.float32),
    }
    meta = {"in_dim": in_dim, "hidden": hidden, "action_dim": action_dim,
            "hid_p": hid_p, "out_p": out_p}
    return prepped, meta


# ---------------------------------------------------------------------------
# Tiling / VMEM heuristics
# ---------------------------------------------------------------------------
def _choose_batch_tile(B, block_b):
    # Enough tiles to (a) cap the tile at ~block_b rows and (b) give the two
    # v7x TensorCores ("parallel" grid axis) at least one tile each once the
    # batch is non-trivial. Deriving tb from the tile count keeps batch-padding
    # waste under SUBLANE rows per tile (vs. up to a full tile otherwise).
    n_tiles = pl.cdiv(B, block_b)
    if B > 2 * SUBLANE:
        n_tiles = max(n_tiles, 2)
    tb = _round_up(pl.cdiv(B, n_tiles), SUBLANE)
    b_pad = _round_up(B, tb)
    return tb, b_pad


def _vmem_limit_bytes(tb, in_dim, hid_p, out_p, w_itemsize):
    # Resident weights single-buffered; x/out blocks double-buffered; bf16 scratch.
    w = (in_dim * hid_p + hid_p * hid_p + hid_p * out_p) * w_itemsize
    b = (2 * hid_p + out_p) * 4
    xo = (tb * in_dim * 4 + tb * out_p * 4) * 2
    h = tb * hid_p * w_itemsize
    need = w + b + xo + h
    # 25% headroom + 2 MiB compiler scratch; floor inside every generation's
    # scoped default, cap below v7x's 64 MiB physical VMEM.
    return int(min(max(need * 5 // 4 + (2 << 20), 16 << 20), 56 << 20))


def _resident_spec(arr):
    # Whole array, constant index_map -> VMEM-resident across all grid steps.
    # Buffered(1): the block never changes, so double-buffering only doubles
    # its VMEM footprint.
    nd = arr.ndim
    return pl.BlockSpec(arr.shape, lambda i, _nd=nd: (0,) * _nd,
                        pipeline_mode=pl.Buffered(1))


# ---------------------------------------------------------------------------
# Forward wrapper
# ---------------------------------------------------------------------------
def critic_discrete_forward(x, prepped, meta, *, block_b=512):
    """x: (B, input_size). prepped/meta from prepare_params()."""
    B, in_dim = x.shape
    assert in_dim == meta["in_dim"], "x feature dim does not match the params"
    hid_p, out_p, action_dim = meta["hid_p"], meta["out_p"], meta["action_dim"]

    tb, b_pad = _choose_batch_tile(B, block_b)
    if b_pad != B:  # only touch x when the batch is not tile-aligned
        x = jnp.pad(x, ((0, b_pad - B), (0, 0)))

    w_itemsize = jnp.dtype(prepped["w1"].dtype).itemsize
    out_padded = pl.pallas_call(
        critic_kernel,
        out_shape=jax.ShapeDtypeStruct((b_pad, out_p), jnp.float32),
        grid=(b_pad // tb,),
        in_specs=[
            pl.BlockSpec((tb, in_dim), lambda i: (i, 0)),   # x: blocked on batch
            _resident_spec(prepped["w1"]), _resident_spec(prepped["b1"]),
            _resident_spec(prepped["w2"]), _resident_spec(prepped["b2"]),
            _resident_spec(prepped["w3"]), _resident_spec(prepped["b3"]),
        ],
        out_specs=pl.BlockSpec((tb, out_p), lambda i: (i, 0)),
        scratch_shapes=[pltpu.VMEM((tb, hid_p), prepped["w1"].dtype)],
        compiler_params=pltpu.CompilerParams(
            dimension_semantics=("parallel",),
            vmem_limit_bytes=_vmem_limit_bytes(tb, in_dim, hid_p, out_p,
                                               w_itemsize)),
    )(x, prepped["w1"], prepped["b1"], prepped["w2"], prepped["b2"],
      prepped["w3"], prepped["b3"])

    return out_padded[:B, :action_dim]


# ---------------------------------------------------------------------------
# Init + reference (mirrors the kernel numerics: bf16 matmuls, f32 accum)
# ---------------------------------------------------------------------------
def init_params(key, input_size, hidden, action_dim):
    """Deterministic init matching nn.Linear defaults; weights stored as (in, out)."""
    ks = jax.random.split(key, 6)

    def linear(kw, kb, fan_in, fan_out):
        bound = 1.0 / (fan_in ** 0.5)
        w = jax.random.uniform(kw, (fan_in, fan_out), jnp.float32, -bound, bound)
        b = jax.random.uniform(kb, (1, fan_out), jnp.float32, -bound, bound)
        return w, b

    w1, b1 = linear(ks[0], ks[1], input_size, hidden)
    w2, b2 = linear(ks[2], ks[3], hidden, hidden)
    w3, b3 = linear(ks[4], ks[5], hidden, action_dim)
    return {"w1": w1, "b1": b1, "w2": w2, "b2": b2, "w3": w3, "b3": b3}


def reference_forward(x, p):
    bf16, f32 = jnp.bfloat16, jnp.float32
    h1 = jnp.dot(x.astype(bf16), p["w1"].astype(bf16),
                 preferred_element_type=f32) + p["b1"]
    h1 = jnp.maximum(h1, 0.0)
    h2 = jnp.dot(h1.astype(bf16), p["w2"].astype(bf16),
                 preferred_element_type=f32) + p["b2"]
    h2 = jnp.maximum(h2, 0.0)
    return jnp.dot(h2.astype(bf16), p["w3"].astype(bf16),
                   preferred_element_type=f32) + p["b3"]


if __name__ == "__main__":
    key = jax.random.PRNGKey(0)
    k_x, k_p = jax.random.split(key)

    batch, input_size, hidden, action_dim = 8, 32, 32, 4
    x = jax.random.normal(k_x, (batch, input_size), jnp.float32)
    params = init_params(k_p, input_size, hidden, action_dim)

    # One-time weight prep (pad + bf16 cast); reused for every forward call.
    prepped, meta = prepare_params(params)

    fwd = jax.jit(lambda xb, pb: critic_discrete_forward(xb, pb, meta))
    out = fwd(x, prepped)
    jax.block_until_ready(out)

    ref = reference_forward(x, params)
    assert out.shape == (batch, action_dim)
    err = float(jnp.max(jnp.abs(out - ref)))
    assert jnp.allclose(out, ref, atol=2e-3, rtol=2e-3), f"max abs err {err}"

    print("KERNEL_OK")
</pallas_src>

<mosaic_0001>
module attributes {stable_mosaic.version = 11 : i64} {
  func.func @critic_kernel(%arg0: i32, %arg1: memref<8x32xf32, #tpu.memory_space<vmem>>, %arg2: memref<32x128xbf16, #tpu.memory_space<vmem>>, %arg3: memref<1x128xf32, #tpu.memory_space<vmem>>, %arg4: memref<128x128xbf16, #tpu.memory_space<vmem>>, %arg5: memref<1x128xf32, #tpu.memory_space<vmem>>, %arg6: memref<128x128xbf16, #tpu.memory_space<vmem>>, %arg7: memref<1x128xf32, #tpu.memory_space<vmem>>, %arg8: memref<8x128xf32, #tpu.memory_space<vmem>>, %arg9: memref<8x128xbf16, #tpu.memory_space<vmem>>) attributes {dimension_semantics = [#tpu.dimension_semantics<parallel>], iteration_bounds = array<i64: 1>, scalar_prefetch = 0 : i64, scratch_operands = 1 : i64, tpu.core_type = #tpu.core_type<tc>, window_params = [{transform_indices = @transform_0, window_bounds = array<i64: 8, 32>}, {pipeline_mode = #tpu.pipeline_mode<synchronous>, transform_indices = @transform_1, window_bounds = array<i64: 32, 128>}, {pipeline_mode = #tpu.pipeline_mode<synchronous>, transform_indices = @transform_2, window_bounds = array<i64: 1, 128>}, {pipeline_mode = #tpu.pipeline_mode<synchronous>, transform_indices = @transform_3, window_bounds = array<i64: 128, 128>}, {pipeline_mode = #tpu.pipeline_mode<synchronous>, transform_indices = @transform_4, window_bounds = array<i64: 1, 128>}, {pipeline_mode = #tpu.pipeline_mode<synchronous>, transform_indices = @transform_5, window_bounds = array<i64: 128, 128>}, {pipeline_mode = #tpu.pipeline_mode<synchronous>, transform_indices = @transform_6, window_bounds = array<i64: 1, 128>}, {transform_indices = @transform_7, window_bounds = array<i64: 8, 128>}]} {
    %c0 = arith.constant 0 : index
    %c0_0 = arith.constant 0 : index
    %0 = vector.load %arg1[%c0, %c0_0] : memref<8x32xf32, #tpu.memory_space<vmem>>, vector<8x32xf32>
    %1 = arith.truncf %0 : vector<8x32xf32> to vector<8x32xbf16>
    %c0_1 = arith.constant 0 : index
    %c0_2 = arith.constant 0 : index
    %2 = vector.load %arg2[%c0_1, %c0_2] : memref<32x128xbf16, #tpu.memory_space<vmem>>, vector<32x128xbf16>
    %cst = arith.constant dense<0.000000e+00> : vector<8x128xf32>
    %3 = tpu.matmul %1, %2, %cst {dimension_numbers = #tpu.dot_dimension_numbers<[1], [0], [0], [1], [0, 0, 1, 1], [], []>} : vector<8x32xbf16>, vector<32x128xbf16>, vector<8x128xf32> -> vector<8x128xf32>
    %c0_3 = arith.constant 0 : index
    %c0_4 = arith.constant 0 : index
    %4 = vector.load %arg3[%c0_3, %c0_4] : memref<1x128xf32, #tpu.memory_space<vmem>>, vector<1x128xf32>
    %5 = vector.broadcast %4 : vector<1x128xf32> to vector<8x128xf32>
    %6 = arith.addf %3, %5 : vector<8x128xf32>
    %cst_5 = arith.constant 0.000000e+00 : f32
    %7 = vector.broadcast %cst_5 : f32 to vector<8x128xf32>
    %8 = arith.maximumf %6, %7 : vector<8x128xf32>
    %9 = arith.truncf %8 : vector<8x128xf32> to vector<8x128xbf16>
    %c0_6 = arith.constant 0 : index
    %c0_7 = arith.constant 0 : index
    %10 = vector.load %arg9[%c0_6, %c0_7] : memref<8x128xbf16, #tpu.memory_space<vmem>>, vector<8x128xbf16>
    tpu.vector_store %arg9[%c0_6, %c0_7], %9 {strides = array<i32>} : memref<8x128xbf16, #tpu.memory_space<vmem>>, vector<8x128xbf16>,
    %c0_8 = arith.constant 0 : index
    %c0_9 = arith.constant 0 : index
    %11 = vector.load %arg9[%c0_8, %c0_9] : memref<8x128xbf16, #tpu.memory_space<vmem>>, vector<8x128xbf16>
    %c0_10 = arith.constant 0 : index
    %c0_11 = arith.constant 0 : index
    %12 = vector.load %arg4[%c0_10, %c0_11] : memref<128x128xbf16, #tpu.memory_space<vmem>>, vector<128x128xbf16>
    %cst_12 = arith.constant dense<0.000000e+00> : vector<8x128xf32>
    %13 = tpu.matmul %11, %12, %cst_12 {dimension_numbers = #tpu.dot_dimension_numbers<[1], [0], [0], [1], [0, 0, 1, 1], [], []>} : vector<8x128xbf16>, vector<128x128xbf16>, vector<8x128xf32> -> vector<8x128xf32>
    %c0_13 = arith.constant 0 : index
    %c0_14 = arith.constant 0 : index
    %14 = vector.load %arg5[%c0_13, %c0_14] : memref<1x128xf32, #tpu.memory_space<vmem>>, vector<1x128xf32>
    %15 = vector.broadcast %14 : vector<1x128xf32> to vector<8x128xf32>
    %16 = arith.addf %13, %15 : vector<8x128xf32>
    %cst_15 = arith.constant 0.000000e+00 : f32
    %17 = vector.broadcast %cst_15 : f32 to vector<8x128xf32>
    %18 = arith.maximumf %16, %17 : vector<8x128xf32>
    %19 = arith.truncf %18 : vector<8x128xf32> to vector<8x128xbf16>
    %c0_16 = arith.constant 0 : index
    %c0_17 = arith.constant 0 : index
    %20 = vector.load %arg9[%c0_16, %c0_17] : memref<8x128xbf16, #tpu.memory_space<vmem>>, vector<8x128xbf16>
    tpu.vector_store %arg9[%c0_16, %c0_17], %19 {strides = array<i32>} : memref<8x128xbf16, #tpu.memory_space<vmem>>, vector<8x128xbf16>,
    %c0_18 = arith.constant 0 : index
    %c0_19 = arith.constant 0 : index
    %21 = vector.load %arg9[%c0_18, %c0_19] : memref<8x128xbf16, #tpu.memory_space<vmem>>, vector<8x128xbf16>
    %c0_20 = arith.constant 0 : index
    %c0_21 = arith.constant 0 : index
    %22 = vector.load %arg6[%c0_20, %c0_21] : memref<128x128xbf16, #tpu.memory_space<vmem>>, vector<128x128xbf16>
    %cst_22 = arith.constant dense<0.000000e+00> : vector<8x128xf32>
    %23 = tpu.matmul %21, %22, %cst_22 {dimension_numbers = #tpu.dot_dimension_numbers<[1], [0], [0], [1], [0, 0, 1, 1], [], []>} : vector<8x128xbf16>, vector<128x128xbf16>, vector<8x128xf32> -> vector<8x128xf32>
    %c0_23 = arith.constant 0 : index
    %c0_24 = arith.constant 0 : index
    %24 = vector.load %arg7[%c0_23, %c0_24] : memref<1x128xf32, #tpu.memory_space<vmem>>, vector<1x128xf32>
    %25 = vector.broadcast %24 : vector<1x128xf32> to vector<8x128xf32>
    %26 = arith.addf %23, %25 : vector<8x128xf32>
    %c0_25 = arith.constant 0 : index
    %c0_26 = arith.constant 0 : index
    %27 = vector.load %arg8[%c0_25, %c0_26] : memref<8x128xf32, #tpu.memory_space<vmem>>, vector<8x128xf32>
    tpu.vector_store %arg8[%c0_25, %c0_26], %26 {strides = array<i32>} : memref<8x128xf32, #tpu.memory_space<vmem>>, vector<8x128xf32>,
    return
  }
  func.func @transform_0(%arg0: i32) -> (i32, i32) {
    %c0_i32 = arith.constant 0 : i32
    %c0_i32_0 = arith.constant 0 : i32
    return %arg0, %c0_i32 : i32, i32
  }
  func.func @transform_1(%arg0: i32) -> (i32, i32) {
    %c0_i32 = arith.constant 0 : i32
    %c0_i32_0 = arith.constant 0 : i32
    %c0_i32_1 = arith.constant 0 : i32
    return %c0_i32, %c0_i32_0 : i32, i32
  }
  func.func @transform_2(%arg0: i32) -> (i32, i32) {
    %c0_i32 = arith.constant 0 : i32
    %c0_i32_0 = arith.constant 0 : i32
    %c0_i32_1 = arith.constant 0 : i32
    return %c0_i32, %c0_i32_0 : i32, i32
  }
  func.func @transform_3(%arg0: i32) -> (i32, i32) {
    %c0_i32 = arith.constant 0 : i32
    %c0_i32_0 = arith.constant 0 : i32
    %c0_i32_1 = arith.constant 0 : i32
    return %c0_i32, %c0_i32_0 : i32, i32
  }
  func.func @transform_4(%arg0: i32) -> (i32, i32) {
    %c0_i32 = arith.constant 0 : i32
    %c0_i32_0 = arith.constant 0 : i32
    %c0_i32_1 = arith.constant 0 : i32
    return %c0_i32, %c0_i32_0 : i32, i32
  }
  func.func @transform_5(%arg0: i32) -> (i32, i32) {
    %c0_i32 = arith.constant 0 : i32
    %c0_i32_0 = arith.constant 0 : i32
    %c0_i32_1 = arith.constant 0 : i32
    return %c0_i32, %c0_i32_0 : i32, i32
  }
  func.func @transform_6(%arg0: i32) -> (i32, i32) {
    %c0_i32 = arith.constant 0 : i32
    %c0_i32_0 = arith.constant 0 : i32
    %c0_i32_1 = arith.constant 0 : i32
    return %c0_i32, %c0_i32_0 : i32, i32
  }
  func.func @transform_7(%arg0: i32) -> (i32, i32) {
    %c0_i32 = arith.constant 0 : i32
    %c0_i32_0 = arith.constant 0 : i32
    return %arg0, %c0_i32 : i32, i32
  }
}

</mosaic_0001>

<llo_original>
// kernel: _lambda_.1
$region0: #{_lambda_.1}
  #allocation0 [shape = 'u32[]', space=smem, size = 0x4, offset = 0x4, fixed_abs, tag = 'smem constant byte address 0x4 - core index']
  #allocation1 [shape = 'u32[72,128]{1,0:T(1,128)}', space=vmem, size = 0x9000, scoped, tag = 'internal scratch']
  #allocation2 [shape = 'bf16[8,128]{1,0:T(8,128)(2,1)}', space=vmem, size = 0x800, scoped, tag = 'scratch operand']
  %s0 = inlined_call_operand.hbm [shape: f32[8,32], index: 0, kind: input, shape index: {}]
  %s1 = inlined_call_operand.hbm [shape: bf16[32,128], index: 1, kind: input, shape index: {}]
  %s2 = inlined_call_operand.hbm [shape: f32[1,128], index: 2, kind: input, shape index: {}]
  %s3 = inlined_call_operand.hbm [shape: bf16[128,128], index: 3, kind: input, shape index: {}]
  %s4 = inlined_call_operand.vmem [shape: f32[1,128], index: 4, kind: input, shape index: {}]
  %s5 = inlined_call_operand.hbm [shape: bf16[128,128], index: 5, kind: input, shape index: {}]
  %s6 = inlined_call_operand.vmem [shape: f32[1,128], index: 6, kind: input, shape index: {}]
  %s7 = inlined_call_operand.vmem [shape: f32[8,128], index: 7, kind: output, shape index: {}]
  %s8 = sld [smem:[#allocation0]]
  $region58: #{_lambda_.1} parent=0
    _
  %s10 = ssub.s32 1, %s8
  %s11 = scalar_select 0, %s10, %s8
  $region1: #{_lambda_.1} parent=0
    #allocation3 [shape = 'u8[4096]{0}', space=vmem, size = 0x1000, scoped, tag = 'input window, operand 0, single buffered']
    #allocation4 [shape = 's32[1]{0}', space=sflag, size = 0x4, scoped, tag = 'scoped memory for _lambda_.1']
    #allocation5 [shape = 'u8[8192]{0}', space=vmem, size = 0x2000, scoped, tag = 'input window, operand 1, single buffered']
    #allocation6 [shape = 's32[1]{0}', space=sflag, size = 0x4, scoped, tag = 'scoped memory for _lambda_.1']
    #allocation7 [shape = 'u8[512]{0}', space=vmem, size = 0x400, scoped, tag = 'input window, operand 2, single buffered']
    #allocation8 [shape = 'u8[32768]{0}', space=vmem, size = 0x8000, scoped, tag = 'input window, operand 3, single buffered']
    #allocation9 [shape = 's32[1]{0}', space=sflag, size = 0x4, scoped, tag = 'scoped memory for _lambda_.1']
    #allocation10 [shape = 'u8[32768]{0}', space=vmem, size = 0x8000, scoped, tag = 'input window, operand 5, single buffered']
    %12 = vsyncpa [#allocation4], 0
    %13 = vsyncpa [#allocation6], 0
    %14 = vsyncpa [#allocation9], 0
    // Predicated region
    $region2: #{_lambda_.1} parent=1 // pred_check
      _
    $region3: #{_lambda_.1} parent=1 // pred_check_branch
      %16 = sbr.rel (0) target = $region5
    $region4: #{_lambda_.1} parent=1 // pred_region
      %18 = vsyncadd [#allocation4], 0
      %s20 = sshll.u32 %s0, 4
      %s21 = int_to_ptr.hbm [resolvable:$true] %s20
      %s22 = sshll.u32 [#allocation3], 4
      %s23 = int_to_ptr.vmem [resolvable:$true] %s22
      %25 = dma.hbm_to_vmem [thread:$0]  %s21, 128, %s23, [#allocation4]
    $region5: #{_lambda_.1} parent=1 // pred_fallthru
      _
    // Predicated region
    $region6: #{_lambda_.1} parent=1 // pred_check
      _
    $region7: #{_lambda_.1} parent=1 // pred_check_branch
      %27 = sbr.rel (0) target = $region9
    $region8: #{_lambda_.1} parent=1 // pred_region
      %29 = vsyncadd [#allocation6], 0
      %s30 = sshll.u32 %s1, 4
      %s31 = int_to_ptr.hbm [resolvable:$true] %s30
      %s32 = sshll.u32 [#allocation5], 4
      %s33 = int_to_ptr.vmem [resolvable:$true] %s32
      %38 = dma.hbm_to_vmem [thread:$0]  %s31, 256, %s33, [#allocation6], 64, 64, 4
    $region9: #{_lambda_.1} parent=1 // pred_fallthru
      _
    // Predicated region
    $region10: #{_lambda_.1} parent=1 // pred_check
      _
    $region11: #{_lambda_.1} parent=1 // pred_check_branch
      %40 = sbr.rel (0) target = $region13
    $region12: #{_lambda_.1} parent=1 // pred_region
      %42 = vsyncadd [#allocation6], 0
      %s44 = sshll.u32 %s2, 4
      %s45 = int_to_ptr.hbm [resolvable:$true] %s44
      %s46 = sshll.u32 [#allocation7], 4
      %s47 = int_to_ptr.vmem [resolvable:$true] %s46
      %49 = dma.hbm_to_vmem [thread:$0]  %s45, 16, %s47, [#allocation6]
    $region13: #{_lambda_.1} parent=1 // pred_fallthru
      _
    // Predicated region
    $region14: #{_lambda_.1} parent=1 // pred_check
      _
    $region15: #{_lambda_.1} parent=1 // pred_check_branch
      %51 = sbr.rel (0) target = $region17
    $region16: #{_lambda_.1} parent=1 // pred_region
      %53 = vsyncadd [#allocation9], 0
      %s54 = sshll.u32 %s3, 4
      %s55 = int_to_ptr.hbm [resolvable:$true] %s54
      %s56 = sshll.u32 [#allocation8], 4
      %s57 = int_to_ptr.vmem [resolvable:$true] %s56
      %62 = dma.hbm_to_vmem [thread:$0]  %s55, 1024, %s57, [#allocation9], 64, 64, 4
    $region17: #{_lambda_.1} parent=1 // pred_fallthru
      _
    // Predicated region
    $region18: #{_lambda_.1} parent=1 // pred_check
      _
    $region19: #{_lambda_.1} parent=1 // pred_check_branch
      %64 = sbr.rel (0) target = $region21
    $region20: #{_lambda_.1} parent=1 // pred_region
      _
    $region21: #{_lambda_.1} parent=1 // pred_fallthru
      _
    // Predicated region
    $region22: #{_lambda_.1} parent=1 // pred_check
      _
    $region23: #{_lambda_.1} parent=1 // pred_check_branch
      %66 = sbr.rel (0) target = $region25
    $region24: #{_lambda_.1} parent=1 // pred_region
      %68 = vsyncadd [#allocation9], 0
      %s69 = sshll.u32 %s5, 4
      %s70 = int_to_ptr.hbm [resolvable:$true] %s69
      %s71 = sshll.u32 [#allocation10], 4
      %s72 = int_to_ptr.vmem [resolvable:$true] %s71
      %77 = dma.hbm_to_vmem [thread:$0]  %s70, 1024, %s72, [#allocation9], 64, 64, 4
    $region25: #{_lambda_.1} parent=1 // pred_fallthru
      _
    // Predicated region
    $region26: #{_lambda_.1} parent=1 // pred_check
      _
    $region27: #{_lambda_.1} parent=1 // pred_check_branch
      %79 = sbr.rel (0) target = $region29
    $region28: #{_lambda_.1} parent=1 // pred_region
      _
    $region29: #{_lambda_.1} parent=1 // pred_fallthru
      _
    // Predicated region
    $region30: #{_lambda_.1} parent=1 // pred_check
      _
    $region31: #{_lambda_.1} parent=1 // pred_check_branch
      %81 = sbr.rel (0) target = $region33
    $region32: #{_lambda_.1} parent=1 // pred_region
      %83 = dma.done [#allocation4], 128
    $region33: #{_lambda_.1} parent=1 // pred_fallthru
      _
    // Predicated region
    $region34: #{_lambda_.1} parent=1 // pred_check
      _
    $region35: #{_lambda_.1} parent=1 // pred_check_branch
      %85 = sbr.rel (0) target = $region37
    $region36: #{_lambda_.1} parent=1 // pred_region
      %87 = dma.done [#allocation6], 256
    $region37: #{_lambda_.1} parent=1 // pred_fallthru
      _
    // Predicated region
    $region38: #{_lambda_.1} parent=1 // pred_check
      _
    $region39: #{_lambda_.1} parent=1 // pred_check_branch
      %89 = sbr.rel (0) target = $region41
    $region40: #{_lambda_.1} parent=1 // pred_region
      %91 = dma.done [#allocation6], 16
    $region41: #{_lambda_.1} parent=1 // pred_fallthru
      _
    // Predicated region
    $region42: #{_lambda_.1} parent=1 // pred_check
      _
    $region43: #{_lambda_.1} parent=1 // pred_check_branch
      %93 = sbr.rel (0) target = $region45
    $region44: #{_lambda_.1} parent=1 // pred_region
      %95 = dma.done [#allocation9], 1024
    $region45: #{_lambda_.1} parent=1 // pred_fallthru
      _
    // Predicated region
    $region46: #{_lambda_.1} parent=1 // pred_check
      _
    $region47: #{_lambda_.1} parent=1 // pred_check_branch
      %97 = sbr.rel (0) target = $region49
    $region48: #{_lambda_.1} parent=1 // pred_region
      %99 = dma.done [#allocation9], 1024
    $region49: #{_lambda_.1} parent=1 // pred_fallthru
      _
    %v101 = vld [vmem:[#allocation3] sm:$0xff]
    %v102 = vpack.c.bf16 %v101, %v101
    %v103 = vld [vmem:[#allocation5] sm:$0xf]
    %v104 = vld [vmem:[#allocation5 + $0x4] sm:$0xf]
    %v105 = vld [vmem:[#allocation5 + $0x8] sm:$0xf]
    %v106 = vld [vmem:[#allocation5 + $0xc] sm:$0xf]
    %v107 = vld [vmem:[#allocation7] sm:$0x1]
    %v109 = vperm.slane %v107, 0
    %v115 = vunpack.c.l.b16 %v103
    %v116 = vunpack.c.l.b16 %v104
    %v117 = vunpack.c.l.b16 %v105
    %v118 = vunpack.c.l.b16 %v106
    %v119 = vpack.c.b16 %v116, %v115
    %v120 = vpack.c.b16 %v118, %v117
    %vm123 = vcmask 261120
    %v125 = vsel %vm123, %v102, 0
    %127 = vmatpush.bf16.msra.mxu0 0
    %128 = vmatpush.bf16.msra.mxu0 0
    %129 = vmatpush.bf16.msra.mxu0 0
    %130 = vmatpush.bf16.msra.mxu0 0
    %131 = vmatpush.bf16.msra.mxu0 0
    %132 = vmatpush.bf16.msra.mxu0 0
    %133 = vmatpush.bf16.msra.mxu0 %v120
    %134 = vmatpush.bf16.msra.mxu0 %v119
    %135 = vmatmul.bf16.gmra.mxu0 %v125
    %v136 = vpop.f32.mrf.mxu0
    %v137 = vadd.f32 %v109, %v136
    %v138 = vpop.f32.mrf.mxu0
    %139 = vdwg.mxu0
    %v140 = vmax.f32 %v137, 0.0
    %v141 = vpack.c.bf16 %v140, %v140
    %142 = vst [vmem:[#allocation2] sm:$0xf] %v141
    %v143 = vld [vmem:[#allocation2] sm:$0xf]
    %v144 = vld [vmem:[#allocation8] sm:$0xf]
    %v145 = vld [vmem:[#allocation8 + $0x4] sm:$0xf]
    %v146 = vld [vmem:[#allocation8 + $0x8] sm:$0xf]
    %v147 = vld [vmem:[#allocation8 + $0xc] sm:$0xf]
    %v148 = vld [vmem:[#allocation8 + $0x10] sm:$0xf]
    %v149 = vld [vmem:[#allocation8 + $0x14] sm:$0xf]
    %v150 = vld [vmem:[#allocation8 + $0x18] sm:$0xf]
    %v151 = vld [vmem:[#allocation8 + $0x1c] sm:$0xf]
    %v152 = vld [vmem:[#allocation8 + $0x20] sm:$0xf]
    %v153 = vld [vmem:[#allocation8 + $0x24] sm:$0xf]
    %v154 = vld [vmem:[#allocation8 + $0x28] sm:$0xf]
    %v155 = vld [vmem:[#allocation8 + $0x2c] sm:$0xf]
    %v156 = vld [vmem:[#allocation8 + $0x30] sm:$0xf]
    %v157 = vld [vmem:[#allocation8 + $0x34] sm:$0xf]
    %v158 = vld [vmem:[#allocation8 + $0x38] sm:$0xf]
    %v159 = vld [vmem:[#allocation8 + $0x3c] sm:$0xf]
    %v160 = vld [vmem:[%s4] sm:$0x1]
    %v162 = vperm.slane %v160, 0
    %v180 = vunpack.c.l.b16 %v144
    %v181 = vunpack.c.l.b16 %v145
    %v182 = vunpack.c.l.b16 %v146
    %v183 = vunpack.c.l.b16 %v147
    %v184 = vunpack.c.l.b16 %v148
    %v185 = vunpack.c.l.b16 %v149
    %v186 = vunpack.c.l.b16 %v150
    %v187 = vunpack.c.l.b16 %v151
    %v188 = vunpack.c.l.b16 %v152
    %v189 = vunpack.c.l.b16 %v153
    %v190 = vunpack.c.l.b16 %v154
    %v191 = vunpack.c.l.b16 %v155
    %v192 = vunpack.c.l.b16 %v156
    %v193 = vunpack.c.l.b16 %v157
    %v194 = vunpack.c.l.b16 %v158
    %v195 = vunpack.c.l.b16 %v159
    %v196 = vpack.c.b16 %v181, %v180
    %v197 = vpack.c.b16 %v183, %v182
    %v198 = vpack.c.b16 %v185, %v184
    %v199 = vpack.c.b16 %v187, %v186
    %v200 = vpack.c.b16 %v189, %v188
    %v201 = vpack.c.b16 %v191, %v190
    %v202 = vpack.c.b16 %v193, %v192
    %v203 = vpack.c.b16 %v195, %v194
    %212 = vmatpush.bf16.msra.mxu0 %v203
    %213 = vmatpush.bf16.msra.mxu0 %v202
    %214 = vmatpush.bf16.msra.mxu0 %v201
    %215 = vmatpush.bf16.msra.mxu0 %v200
    %216 = vmatpush.bf16.msra.mxu0 %v199
    %217 = vmatpush.bf16.msra.mxu0 %v198
    %218 = vmatpush.bf16.msra.mxu0 %v197
    %219 = vmatpush.bf16.msra.mxu0 %v196
    %220 = vmatmul.bf16.gmra.mxu0 %v143
    %v221 = vpop.f32.mrf.mxu0
    %v222 = vadd.f32 %v162, %v221
    %v223 = vpop.f32.mrf.mxu0
    %224 = vdwg.mxu0
    %v225 = vmax.f32 %v222, 0.0
    %v226 = vpack.c.bf16 %v225, %v225
    %227 = vst [vmem:[#allocation2] sm:$0xf] %v226
    %v228 = vld [vmem:[#allocation2] sm:$0xf]
    %v229 = vld [vmem:[#allocation10] sm:$0xf]
    %v230 = vld [vmem:[#allocation10 + $0x4] sm:$0xf]
    %v231 = vld [vmem:[#allocation10 + $0x8] sm:$0xf]
    %v232 = vld [vmem:[#allocation10 + $0xc] sm:$0xf]
    %v233 = vld [vmem:[#allocation10 + $0x10] sm:$0xf]
    %v234 = vld [vmem:[#allocation10 + $0x14] sm:$0xf]
    %v235 = vld [vmem:[#allocation10 + $0x18] sm:$0xf]
    %v236 = vld [vmem:[#allocation10 + $0x1c] sm:$0xf]
    %v237 = vld [vmem:[#allocation10 + $0x20] sm:$0xf]
    %v238 = vld [vmem:[#allocation10 + $0x24] sm:$0xf]
    %v239 = vld [vmem:[#allocation10 + $0x28] sm:$0xf]
    %v240 = vld [vmem:[#allocation10 + $0x2c] sm:$0xf]
    %v241 = vld [vmem:[#allocation10 + $0x30] sm:$0xf]
    %v242 = vld [vmem:[#allocation10 + $0x34] sm:$0xf]
    %v243 = vld [vmem:[#allocation10 + $0x38] sm:$0xf]
    %v244 = vld [vmem:[#allocation10 + $0x3c] sm:$0xf]
    %v245 = vld [vmem:[%s6] sm:$0x1]
    %v247 = vperm.slane %v245, 0
    %v265 = vunpack.c.l.b16 %v229
    %v266 = vunpack.c.l.b16 %v230
    %v267 = vunpack.c.l.b16 %v231
    %v268 = vunpack.c.l.b16 %v232
    %v269 = vunpack.c.l.b16 %v233
    %v270 = vunpack.c.l.b16 %v234
    %v271 = vunpack.c.l.b16 %v235
    %v272 = vunpack.c.l.b16 %v236
    %v273 = vunpack.c.l.b16 %v237
    %v274 = vunpack.c.l.b16 %v238
    %v275 = vunpack.c.l.b16 %v239
    %v276 = vunpack.c.l.b16 %v240
    %v277 = vunpack.c.l.b16 %v241
    %v278 = vunpack.c.l.b16 %v242
    %v279 = vunpack.c.l.b16 %v243
    %v280 = vunpack.c.l.b16 %v244
    %v281 = vpack.c.b16 %v266, %v265
    %v282 = vpack.c.b16 %v268, %v267
    %v283 = vpack.c.b16 %v270, %v269
    %v284 = vpack.c.b16 %v272, %v271
    %v285 = vpack.c.b16 %v274, %v273
    %v286 = vpack.c.b16 %v276, %v275
    %v287 = vpack.c.b16 %v278, %v277
    %v288 = vpack.c.b16 %v280, %v279
    %297 = vmatpush.bf16.msra.mxu0 %v288
    %298 = vmatpush.bf16.msra.mxu0 %v287
    %299 = vmatpush.bf16.msra.mxu0 %v286
    %300 = vmatpush.bf16.msra.mxu0 %v285
    %301 = vmatpush.bf16.msra.mxu0 %v284
    %302 = vmatpush.bf16.msra.mxu0 %v283
    %303 = vmatpush.bf16.msra.mxu0 %v282
    %304 = vmatpush.bf16.msra.mxu0 %v281
    %305 = vmatmul.bf16.gmra.mxu0 %v228
    %v306 = vpop.f32.mrf.mxu0
    %v307 = vadd.f32 %v247, %v306
    %v308 = vpop.f32.mrf.mxu0
    %309 = vdwg.mxu0
    %310 = vst [vmem:[%s7] sm:$0xff] %v307
    // Predicated region
    $region50: #{_lambda_.1} parent=1 // pred_check
      _
    $region51: #{_lambda_.1} parent=1 // pred_check_branch
      %312 = sbr.rel (0) target = $region53
    $region52: #{_lambda_.1} parent=1 // pred_region
      _
    $region53: #{_lambda_.1} parent=1 // pred_fallthru
      _
    // Predicated region
    $region54: #{_lambda_.1} parent=1 // pred_check
      _
    $region55: #{_lambda_.1} parent=1 // pred_check_branch
      %314 = sbr.rel (0) target = $region57
    $region56: #{_lambda_.1} parent=1 // pred_region
      _
    $region57: #{_lambda_.1} parent=1 // pred_fallthru
      _
    %315 = vsyncpa [#allocation4], 1
    %316 = vsyncpa [#allocation6], 1
    %317 = vsyncpa [#allocation9], 1

</llo_original>
